<compile_context>
chip_gen: v5e
topology: v5e:2x2
jax: 0.10.0
libtpu: 0.0.40
codegen_flags: <defaults>
</compile_context>

<pallas_src>
import numpy as np
import jax
import jax.numpy as jnp
from jax.experimental import pallas as pl
from jax.experimental.pallas import tpu as pltpu


def _round_up(x, m):
    return (x + m - 1) // m * m


def _has_int8_mxu():
    """int8 MXU path exists on v4/v5/v6; v7x is fp8-only (not exact here)."""
    try:
        kind = jax.devices()[0].device_kind.lower()
    except Exception:
        return False
    return any(v in kind for v in ("v4", "v5", "v6"))


def _forest_kernel(x_ref, w1_ref, b1_ref, w2_ref, b2_ref, w3_ref, out_ref, acc_ref):
    g = pl.program_id(1)

    @pl.when(g == 0)
    def _():
        acc_ref[...] = jnp.zeros_like(acc_ref)

    x = x_ref[...]                                                # (TB, F) f32
    # Internal-node decisions for every tree in this group (exact f32 compare).
    d_bool = (jnp.dot(x, w1_ref[...], preferred_element_type=jnp.float32)
              < b1_ref[...])                                      # (TB, GNIp) bool

    if jnp.issubdtype(w2_ref.dtype, jnp.integer):
        # int8 x int8 -> int32 MXU path (v4/v5/v6): exact integer path counts.
        cnt = jnp.dot(d_bool.astype(jnp.int8), w2_ref[...],
                      preferred_element_type=jnp.int32)           # (TB, GNLp) i32
    else:
        # bf16 x bf16 -> f32 path (v7x / fallback): {0,1} x {-1,0,1} is exact.
        cnt = jnp.dot(d_bool.astype(jnp.bfloat16), w2_ref[...],
                      preferred_element_type=jnp.float32)
    l = (cnt == b2_ref[...]).astype(jnp.float32)                  # one-hot per tree

    # W3 rows are pre-scaled by 1/T, so this accumulates the ensemble average.
    acc_ref[...] += jnp.dot(l, w3_ref[...], preferred_element_type=jnp.float32)

    @pl.when(g == pl.num_programs(1) - 1)
    def _():
        out_ref[...] = acc_ref[...]


def _vmem_limit_bytes(TB, F, GNIp, GNLp, Cpad, single_buffer_weights, w2_itemsize):
    nbuf_w = 1 if single_buffer_weights else 2
    resident = (
        2 * TB * F * 4                         # x tile (double buffered)
        + 2 * TB * Cpad * 4                    # out tile (double buffered)
        + TB * Cpad * 4                        # f32 accumulator scratch
        + TB * (GNIp + GNLp) * 4               # d / l intermediates (upper bound)
        + nbuf_w * (F * GNIp * 4 + GNIp * 4
                    + GNIp * GNLp * w2_itemsize
                    + GNLp * 4 + GNLp * Cpad * 4))
    return int(min(max(resident * 2 + (2 << 20), 8 << 20), 100 << 20))


def _build_forest_call(TB, F, GNIp, GNLp, Cpad, NG, n_btiles,
                       single_buffer_weights, vmem_limit):
    def wspec(shape):
        if single_buffer_weights:
            # Grid-invariant weight slab: one VMEM buffer instead of two.
            return pl.BlockSpec(shape, lambda i, g: (g, 0, 0),
                                pipeline_mode=pl.Buffered(1))
        return pl.BlockSpec(shape, lambda i, g: (g, 0, 0))

    return pl.pallas_call(
        _forest_kernel,
        out_shape=jax.ShapeDtypeStruct((n_btiles * TB, Cpad), jnp.float32),
        grid_spec=pltpu.PrefetchScalarGridSpec(
            num_scalar_prefetch=0,
            grid=(n_btiles, NG),                          # reduction (groups) last
            in_specs=[
                pl.BlockSpec((TB, F), lambda i, g: (i, 0)),   # x batch tile
                wspec((None, F, GNIp)),                       # W1 slab
                wspec((None, 1, GNIp)),                       # b1 slab
                wspec((None, GNIp, GNLp)),                    # block-diag W2 slab
                wspec((None, 1, GNLp)),                       # b2 slab
                wspec((None, GNLp, Cpad)),                    # W3 slab (already / T)
            ],
            out_specs=pl.BlockSpec((TB, Cpad), lambda i, g: (i, 0)),
            scratch_shapes=[pltpu.VMEM((TB, Cpad), jnp.float32)],
        ),
        compiler_params=pltpu.CompilerParams(
            dimension_semantics=("parallel", "arbitrary"),
            vmem_limit_bytes=vmem_limit),
    )


def random_forest(x, w1, b1, w2, b2, w3):
    """x: (B, F).  Stacked per-tree params:
       w1 (T,F,Ni)  b1 (T,1,Ni)  w2 (T,Ni,Nl)  b2 (T,1,Nl)  w3 (T,Nl,C)."""
    B, F = x.shape
    T, _, Ni = w1.shape
    Nl = w2.shape[2]
    C = w3.shape[2]

    # ---- host-side packing (pure numpy; parameters are concrete) ----------
    w1_h = np.asarray(w1, np.float32)
    b1_h = np.asarray(b1, np.float32)
    w2_h = np.asarray(w2, np.float32)
    b2_h = np.asarray(b2, np.float32)
    w3_h = np.asarray(w3, np.float32)

    # Group size: enough trees per slab to fill a 256-wide MXU tile, but never the
    # whole forest (dense block-diagonal W2 wastes (T-1)/T of FLOPs, VMEM O(T^2)).
    G = max(1, min(T, 256 // max(Ni, Nl, 1)))
    NG = -(-T // G)                                   # number of tree groups
    GNIp = _round_up(G * Ni, 128)                     # lane-aligned slab dims
    GNLp = _round_up(G * Nl, 128)
    Cpad = _round_up(max(C, 1), 128)                  # lane-dense output stores

    w1p = np.zeros((NG, F, GNIp), np.float32)
    b1p = np.full((NG, 1, GNIp), -1.0, np.float32)    # pad: 0 < -1 False -> d = 0
    w2p = np.zeros((NG, GNIp, GNLp), np.float32)
    b2p = np.full((NG, 1, GNLp), -1.0, np.float32)    # pad: 0 == -1 False -> l = 0
    w3p = np.zeros((NG, GNLp, Cpad), np.float32)

    inv_T = 1.0 / T                                   # fold the ensemble average
    for t in range(T):
        g, j = divmod(t, G)
        w1p[g, :, j * Ni:(j + 1) * Ni] = w1_h[t]
        b1p[g, 0, j * Ni:(j + 1) * Ni] = b1_h[t, 0]
        w2p[g, j * Ni:(j + 1) * Ni, j * Nl:(j + 1) * Nl] = w2_h[t]
        b2p[g, 0, j * Nl:(j + 1) * Nl] = b2_h[t, 0]
        w3p[g, j * Nl:(j + 1) * Nl, :C] = w3_h[t] * inv_T

    # ---- batch tiling ------------------------------------------------------
    Balign = _round_up(B, 8)
    TB = min(512 if GNLp <= 512 else 256, Balign)     # fill the 256-row MXU
    if Balign >= 16 and Balign // TB < 2:
        TB = _round_up(-(-Balign // 2), 8)            # >=2 tiles: both v7x TCs busy
    Bp = -(-Balign // TB) * TB
    n_btiles = Bp // TB
    xp = jnp.pad(jnp.asarray(x, jnp.float32), ((0, Bp - B), (0, 0)))

    w1d = jnp.asarray(w1p)
    b1d = jnp.asarray(b1p)
    w3d = jnp.asarray(w3p)

    use_i8 = _has_int8_mxu()
    configs = [(use_i8, NG == 1)]                     # (int8 W2 path, single-buffer)
    if configs[0] != (False, False):
        configs.append((False, False))                # known-good conservative path

    out, last_err = None, None
    for cfg_i8, cfg_single in configs:
        if cfg_i8:
            w2d = jnp.asarray(w2p.astype(np.int8))    # {-1,0,1}: exact in int8
            b2d = jnp.asarray(b2p.astype(np.int32))   # integer path counts
        else:
            w2d = jnp.asarray(w2p, jnp.bfloat16)      # {-1,0,1}: exact in bf16
            b2d = jnp.asarray(b2p)
        vmem_limit = _vmem_limit_bytes(TB, F, GNIp, GNLp, Cpad, cfg_single,
                                       1 if cfg_i8 else 2)
        try:
            call = _build_forest_call(TB, F, GNIp, GNLp, Cpad, NG, n_btiles,
                                      cfg_single, vmem_limit)
            out = jax.block_until_ready(call(xp, w1d, b1d, w2d, b2d, w3d))
            break
        except Exception as e:                        # fall back to conservative cfg
            last_err, out = e, None
    if out is None:
        raise last_err

    # TODO(synk): downstream consumers could read the (Bp, Cpad) padded slab
    # directly to avoid this extra XLA slice copy.
    return out[:B, :C]


def _make_forest_params(key, n_trees, n_features, depth, n_classes):
    """Deterministic synthetic complete-binary-tree parameters (hummingbird GEMM form)."""
    n_int = 2 ** depth - 1
    n_leaf = 2 ** depth

    w1 = np.zeros((n_trees, n_features, n_int), np.float32)
    b1 = np.zeros((n_trees, 1, n_int), np.float32)
    w2 = np.zeros((n_trees, n_int, n_leaf), np.float32)
    b2 = np.zeros((n_trees, 1, n_leaf), np.float32)
    w3 = np.zeros((n_trees, n_leaf, n_classes), np.float32)

    for t in range(n_trees):
        key, k_feat, k_thr, k_leaf = jax.random.split(key, 4)
        feat_idx = np.asarray(
            jax.random.randint(k_feat, (n_int,), 0, n_features))
        thresholds = np.asarray(
            jax.random.uniform(k_thr, (n_int,), minval=0.2, maxval=0.8))
        leaf_vals = np.asarray(
            jax.random.normal(k_leaf, (n_leaf, n_classes)))

        for i in range(n_int):
            w1[t, feat_idx[i], i] = 1.0      # one-hot feature selector
            b1[t, 0, i] = thresholds[i]

        # complete binary tree: path constraints for each leaf
        for leaf in range(n_leaf):
            node = 0
            true_count = 0
            for d in range(depth):
                go_right = (leaf >> (depth - 1 - d)) & 1
                if go_right:
                    w2[t, node, leaf] = -1.0   # requires decision == 0
                else:
                    w2[t, node, leaf] = 1.0    # requires decision == 1
                    true_count += 1
                node = 2 * node + 1 + go_right
            b2[t, 0, leaf] = float(true_count)

        w3[t] = leaf_vals

    return (jnp.asarray(w1), jnp.asarray(b1), jnp.asarray(w2),
            jnp.asarray(b2), jnp.asarray(w3))


def _reference(x, w1, b1, w2, b2, w3):
    d = (jnp.einsum("bf,tfn->tbn", x, w1) < b1).astype(jnp.float32)
    l = (jnp.einsum("tbn,tnl->tbl", d, w2) == b2).astype(jnp.float32)
    y = jnp.einsum("tbl,tlc->tbc", l, w3)
    return jnp.sum(y, axis=0) / w1.shape[0]


if __name__ == "__main__":
    key = jax.random.PRNGKey(0)
    k_x, k_p = jax.random.split(key)

    n_trees, n_features, depth, n_classes = 4, 16, 3, 3
    batch = 8

    x = jax.random.uniform(k_x, (batch, n_features), dtype=jnp.float32)
    w1, b1, w2, b2, w3 = _make_forest_params(
        k_p, n_trees, n_features, depth, n_classes)

    out = random_forest(x, w1, b1, w2, b2, w3)
    out = jax.block_until_ready(out)

    ref = _reference(x, w1, b1, w2, b2, w3)
    assert out.shape == (batch, n_classes)
    assert np.allclose(np.asarray(out), np.asarray(ref), atol=1e-5), "mismatch vs reference"

    print("KERNEL_OK")
</pallas_src>

<mosaic_0001>
module attributes {stable_mosaic.version = 11 : i64} {
  func.func @_forest_kernel(%arg0: i32, %arg1: i32, %arg2: memref<8x16xf32, #tpu.memory_space<vmem>>, %arg3: memref<1x16x128xf32, #tpu.memory_space<vmem>>, %arg4: memref<1x1x128xf32, #tpu.memory_space<vmem>>, %arg5: memref<1x128x128xbf16, #tpu.memory_space<vmem>>, %arg6: memref<1x1x128xf32, #tpu.memory_space<vmem>>, %arg7: memref<1x128x128xf32, #tpu.memory_space<vmem>>, %arg8: memref<8x128xf32, #tpu.memory_space<vmem>>, %arg9: memref<8x128xf32, #tpu.memory_space<vmem>>) attributes {dimension_semantics = [#tpu.dimension_semantics<parallel>, #tpu.dimension_semantics<arbitrary>], iteration_bounds = array<i64: 1, 1>, scalar_prefetch = 0 : i64, scratch_operands = 1 : i64, tpu.core_type = #tpu.core_type<tc>, window_params = [{transform_indices = @transform_0, window_bounds = array<i64: 8, 16>}, {pipeline_mode = #tpu.pipeline_mode<synchronous>, transform_indices = @transform_1, window_bounds = array<i64: 1, 16, 128>}, {pipeline_mode = #tpu.pipeline_mode<synchronous>, transform_indices = @transform_2, window_bounds = array<i64: 1, 1, 128>}, {pipeline_mode = #tpu.pipeline_mode<synchronous>, transform_indices = @transform_3, window_bounds = array<i64: 1, 128, 128>}, {pipeline_mode = #tpu.pipeline_mode<synchronous>, transform_indices = @transform_4, window_bounds = array<i64: 1, 1, 128>}, {pipeline_mode = #tpu.pipeline_mode<synchronous>, transform_indices = @transform_5, window_bounds = array<i64: 1, 128, 128>}, {transform_indices = @transform_6, window_bounds = array<i64: 8, 128>}]} {
    %c0_i32 = arith.constant 0 : i32
    %0 = arith.cmpi eq, %arg1, %c0_i32 : i32
    %1 = arith.extui %0 : i1 to i32
    %c0_i32_0 = arith.constant 0 : i32
    %2 = arith.cmpi ne, %1, %c0_i32_0 : i32
    scf.if %2 {
      %cst_25 = arith.constant 0.000000e+00 : f32
      %32 = vector.broadcast %cst_25 : f32 to vector<8x128xf32>
      %c0_26 = arith.constant 0 : index
      %c0_27 = arith.constant 0 : index
      %33 = vector.load %arg9[%c0_26, %c0_27] : memref<8x128xf32, #tpu.memory_space<vmem>>, vector<8x128xf32>
      tpu.vector_store %arg9[%c0_26, %c0_27], %32 {strides = array<i32>} : memref<8x128xf32, #tpu.memory_space<vmem>>, vector<8x128xf32>,
    } else {
    }
    %c0 = arith.constant 0 : index
    %c0_1 = arith.constant 0 : index
    %3 = vector.load %arg2[%c0, %c0_1] : memref<8x16xf32, #tpu.memory_space<vmem>>, vector<8x16xf32>
    %c0_2 = arith.constant 0 : index
    %c0_3 = arith.constant 0 : index
    %c0_4 = arith.constant 0 : index
    %4 = vector.load %arg3[%c0_2, %c0_3, %c0_4] : memref<1x16x128xf32, #tpu.memory_space<vmem>>, vector<1x16x128xf32>
    %5 = vector.shape_cast %4 : vector<1x16x128xf32> to vector<16x128xf32>
    %cst = arith.constant dense<0.000000e+00> : vector<8x128xf32>
    %6 = tpu.matmul %3, %5, %cst {dimension_numbers = #tpu.dot_dimension_numbers<[1], [0], [0], [1], [0, 0, 1, 1], [], []>} : vector<8x16xf32>, vector<16x128xf32>, vector<8x128xf32> -> vector<8x128xf32>
    %c0_5 = arith.constant 0 : index
    %c0_6 = arith.constant 0 : index
    %c0_7 = arith.constant 0 : index
    %7 = vector.load %arg4[%c0_5, %c0_6, %c0_7] : memref<1x1x128xf32, #tpu.memory_space<vmem>>, vector<1x1x128xf32>
    %8 = vector.shape_cast %7 : vector<1x1x128xf32> to vector<1x128xf32>
    %9 = vector.broadcast %8 : vector<1x128xf32> to vector<8x128xf32>
    %10 = arith.cmpf olt, %6, %9 : vector<8x128xf32>
    %11 = arith.extui %10 : vector<8x128xi1> to vector<8x128xi32>
    %12 = arith.sitofp %11 : vector<8x128xi32> to vector<8x128xf32>
    %13 = arith.truncf %12 : vector<8x128xf32> to vector<8x128xbf16>
    %c0_8 = arith.constant 0 : index
    %c0_9 = arith.constant 0 : index
    %c0_10 = arith.constant 0 : index
    %14 = vector.load %arg5[%c0_8, %c0_9, %c0_10] : memref<1x128x128xbf16, #tpu.memory_space<vmem>>, vector<1x128x128xbf16>
    %15 = vector.shape_cast %14 : vector<1x128x128xbf16> to vector<128x128xbf16>
    %cst_11 = arith.constant dense<0.000000e+00> : vector<8x128xf32>
    %16 = tpu.matmul %13, %15, %cst_11 {dimension_numbers = #tpu.dot_dimension_numbers<[1], [0], [0], [1], [0, 0, 1, 1], [], []>} : vector<8x128xbf16>, vector<128x128xbf16>, vector<8x128xf32> -> vector<8x128xf32>
    %c0_12 = arith.constant 0 : index
    %c0_13 = arith.constant 0 : index
    %c0_14 = arith.constant 0 : index
    %17 = vector.load %arg6[%c0_12, %c0_13, %c0_14] : memref<1x1x128xf32, #tpu.memory_space<vmem>>, vector<1x1x128xf32>
    %18 = vector.shape_cast %17 : vector<1x1x128xf32> to vector<1x128xf32>
    %19 = vector.broadcast %18 : vector<1x128xf32> to vector<8x128xf32>
    %20 = arith.cmpf oeq, %16, %19 : vector<8x128xf32>
    %21 = arith.extui %20 : vector<8x128xi1> to vector<8x128xi32>
    %22 = arith.sitofp %21 : vector<8x128xi32> to vector<8x128xf32>
    %c0_15 = arith.constant 0 : index
    %c0_16 = arith.constant 0 : index
    %23 = vector.load %arg9[%c0_15, %c0_16] : memref<8x128xf32, #tpu.memory_space<vmem>>, vector<8x128xf32>
    %c0_17 = arith.constant 0 : index
    %c0_18 = arith.constant 0 : index
    %c0_19 = arith.constant 0 : index
    %24 = vector.load %arg7[%c0_17, %c0_18, %c0_19] : memref<1x128x128xf32, #tpu.memory_space<vmem>>, vector<1x128x128xf32>
    %25 = vector.shape_cast %24 : vector<1x128x128xf32> to vector<128x128xf32>
    %cst_20 = arith.constant dense<0.000000e+00> : vector<8x128xf32>
    %26 = tpu.matmul %22, %25, %cst_20 {dimension_numbers = #tpu.dot_dimension_numbers<[1], [0], [0], [1], [0, 0, 1, 1], [], []>} : vector<8x128xf32>, vector<128x128xf32>, vector<8x128xf32> -> vector<8x128xf32>
    %27 = arith.addf %23, %26 : vector<8x128xf32>
    %c0_21 = arith.constant 0 : index
    %c0_22 = arith.constant 0 : index
    %28 = vector.load %arg9[%c0_21, %c0_22] : memref<8x128xf32, #tpu.memory_space<vmem>>, vector<8x128xf32>
    tpu.vector_store %arg9[%c0_21, %c0_22], %27 {strides = array<i32>} : memref<8x128xf32, #tpu.memory_space<vmem>>, vector<8x128xf32>,
    %c0_i32_23 = arith.constant 0 : i32
    %29 = arith.cmpi eq, %arg1, %c0_i32_23 : i32
    %30 = arith.extui %29 : i1 to i32
    %c0_i32_24 = arith.constant 0 : i32
    %31 = arith.cmpi ne, %30, %c0_i32_24 : i32
    scf.if %31 {
      %c0_25 = arith.constant 0 : index
      %c0_26 = arith.constant 0 : index
      %32 = vector.load %arg9[%c0_25, %c0_26] : memref<8x128xf32, #tpu.memory_space<vmem>>, vector<8x128xf32>
      %c0_27 = arith.constant 0 : index
      %c0_28 = arith.constant 0 : index
      %33 = vector.load %arg8[%c0_27, %c0_28] : memref<8x128xf32, #tpu.memory_space<vmem>>, vector<8x128xf32>
      tpu.vector_store %arg8[%c0_27, %c0_28], %32 {strides = array<i32>} : memref<8x128xf32, #tpu.memory_space<vmem>>, vector<8x128xf32>,
    } else {
    }
    return
  }
  func.func @transform_0(%arg0: i32, %arg1: i32) -> (i32, i32) {
    %c0_i32 = arith.constant 0 : i32
    %c0_i32_0 = arith.constant 0 : i32
    return %arg0, %c0_i32 : i32, i32
  }
  func.func @transform_1(%arg0: i32, %arg1: i32) -> (i32, i32, i32) {
    %c0_i32 = arith.constant 0 : i32
    %c0_i32_0 = arith.constant 0 : i32
    %c0_i32_1 = arith.constant 0 : i32
    return %arg1, %c0_i32, %c0_i32_0 : i32, i32, i32
  }
  func.func @transform_2(%arg0: i32, %arg1: i32) -> (i32, i32, i32) {
    %c0_i32 = arith.constant 0 : i32
    %c0_i32_0 = arith.constant 0 : i32
    %c0_i32_1 = arith.constant 0 : i32
    return %arg1, %c0_i32, %c0_i32_0 : i32, i32, i32
  }
  func.func @transform_3(%arg0: i32, %arg1: i32) -> (i32, i32, i32) {
    %c0_i32 = arith.constant 0 : i32
    %c0_i32_0 = arith.constant 0 : i32
    %c0_i32_1 = arith.constant 0 : i32
    return %arg1, %c0_i32, %c0_i32_0 : i32, i32, i32
  }
  func.func @transform_4(%arg0: i32, %arg1: i32) -> (i32, i32, i32) {
    %c0_i32 = arith.constant 0 : i32
    %c0_i32_0 = arith.constant 0 : i32
    %c0_i32_1 = arith.constant 0 : i32
    return %arg1, %c0_i32, %c0_i32_0 : i32, i32, i32
  }
  func.func @transform_5(%arg0: i32, %arg1: i32) -> (i32, i32, i32) {
    %c0_i32 = arith.constant 0 : i32
    %c0_i32_0 = arith.constant 0 : i32
    %c0_i32_1 = arith.constant 0 : i32
    return %arg1, %c0_i32, %c0_i32_0 : i32, i32, i32
  }
  func.func @transform_6(%arg0: i32, %arg1: i32) -> (i32, i32) {
    %c0_i32 = arith.constant 0 : i32
    %c0_i32_0 = arith.constant 0 : i32
    return %arg0, %c0_i32 : i32, i32
  }
}

module attributes {stable_mosaic.version = 11 : i64} {
  func.func @_forest_kernel(%arg0: i32, %arg1: i32, %arg2: memref<8x16xf32, #tpu.memory_space<vmem>>, %arg3: memref<1x16x128xf32, #tpu.memory_space<vmem>>, %arg4: memref<1x1x128xf32, #tpu.memory_space<vmem>>, %arg5: memref<1x128x128xbf16, #tpu.memory_space<vmem>>, %arg6: memref<1x1x128xf32, #tpu.memory_space<vmem>>, %arg7: memref<1x128x128xf32, #tpu.memory_space<vmem>>, %arg8: memref<8x128xf32, #tpu.memory_space<vmem>>, %arg9: memref<8x128xf32, #tpu.memory_space<vmem>>) attributes {dimension_semantics = [#tpu.dimension_semantics<parallel>, #tpu.dimension_semantics<arbitrary>], iteration_bounds = array<i64: 1, 1>, scalar_prefetch = 0 : i64, scratch_operands = 1 : i64, tpu.core_type = #tpu.core_type<tc>, window_params = [{transform_indices = @transform_0, window_bounds = array<i64: 8, 16>}, {transform_indices = @transform_1, window_bounds = array<i64: 1, 16, 128>}, {transform_indices = @transform_2, window_bounds = array<i64: 1, 1, 128>}, {transform_indices = @transform_3, window_bounds = array<i64: 1, 128, 128>}, {transform_indices = @transform_4, window_bounds = array<i64: 1, 1, 128>}, {transform_indices = @transform_5, window_bounds = array<i64: 1, 128, 128>}, {transform_indices = @transform_6, window_bounds = array<i64: 8, 128>}]} {
    %c0_i32 = arith.constant 0 : i32
    %0 = arith.cmpi eq, %arg1, %c0_i32 : i32
    %1 = arith.extui %0 : i1 to i32
    %c0_i32_0 = arith.constant 0 : i32
    %2 = arith.cmpi ne, %1, %c0_i32_0 : i32
    scf.if %2 {
      %cst_25 = arith.constant 0.000000e+00 : f32
      %32 = vector.broadcast %cst_25 : f32 to vector<8x128xf32>
      %c0_26 = arith.constant 0 : index
      %c0_27 = arith.constant 0 : index
      %33 = vector.load %arg9[%c0_26, %c0_27] : memref<8x128xf32, #tpu.memory_space<vmem>>, vector<8x128xf32>
      tpu.vector_store %arg9[%c0_26, %c0_27], %32 {strides = array<i32>} : memref<8x128xf32, #tpu.memory_space<vmem>>, vector<8x128xf32>,
    } else {
    }
    %c0 = arith.constant 0 : index
    %c0_1 = arith.constant 0 : index
    %3 = vector.load %arg2[%c0, %c0_1] : memref<8x16xf32, #tpu.memory_space<vmem>>, vector<8x16xf32>
    %c0_2 = arith.constant 0 : index
    %c0_3 = arith.constant 0 : index
    %c0_4 = arith.constant 0 : index
    %4 = vector.load %arg3[%c0_2, %c0_3, %c0_4] : memref<1x16x128xf32, #tpu.memory_space<vmem>>, vector<1x16x128xf32>
    %5 = vector.shape_cast %4 : vector<1x16x128xf32> to vector<16x128xf32>
    %cst = arith.constant dense<0.000000e+00> : vector<8x128xf32>
    %6 = tpu.matmul %3, %5, %cst {dimension_numbers = #tpu.dot_dimension_numbers<[1], [0], [0], [1], [0, 0, 1, 1], [], []>} : vector<8x16xf32>, vector<16x128xf32>, vector<8x128xf32> -> vector<8x128xf32>
    %c0_5 = arith.constant 0 : index
    %c0_6 = arith.constant 0 : index
    %c0_7 = arith.constant 0 : index
    %7 = vector.load %arg4[%c0_5, %c0_6, %c0_7] : memref<1x1x128xf32, #tpu.memory_space<vmem>>, vector<1x1x128xf32>
    %8 = vector.shape_cast %7 : vector<1x1x128xf32> to vector<1x128xf32>
    %9 = vector.broadcast %8 : vector<1x128xf32> to vector<8x128xf32>
    %10 = arith.cmpf olt, %6, %9 : vector<8x128xf32>
    %11 = arith.extui %10 : vector<8x128xi1> to vector<8x128xi32>
    %12 = arith.sitofp %11 : vector<8x128xi32> to vector<8x128xf32>
    %13 = arith.truncf %12 : vector<8x128xf32> to vector<8x128xbf16>
    %c0_8 = arith.constant 0 : index
    %c0_9 = arith.constant 0 : index
    %c0_10 = arith.constant 0 : index
    %14 = vector.load %arg5[%c0_8, %c0_9, %c0_10] : memref<1x128x128xbf16, #tpu.memory_space<vmem>>, vector<1x128x128xbf16>
    %15 = vector.shape_cast %14 : vector<1x128x128xbf16> to vector<128x128xbf16>
    %cst_11 = arith.constant dense<0.000000e+00> : vector<8x128xf32>
    %16 = tpu.matmul %13, %15, %cst_11 {dimension_numbers = #tpu.dot_dimension_numbers<[1], [0], [0], [1], [0, 0, 1, 1], [], []>} : vector<8x128xbf16>, vector<128x128xbf16>, vector<8x128xf32> -> vector<8x128xf32>
    %c0_12 = arith.constant 0 : index
    %c0_13 = arith.constant 0 : index
    %c0_14 = arith.constant 0 : index
    %17 = vector.load %arg6[%c0_12, %c0_13, %c0_14] : memref<1x1x128xf32, #tpu.memory_space<vmem>>, vector<1x1x128xf32>
    %18 = vector.shape_cast %17 : vector<1x1x128xf32> to vector<1x128xf32>
    %19 = vector.broadcast %18 : vector<1x128xf32> to vector<8x128xf32>
    %20 = arith.cmpf oeq, %16, %19 : vector<8x128xf32>
    %21 = arith.extui %20 : vector<8x128xi1> to vector<8x128xi32>
    %22 = arith.sitofp %21 : vector<8x128xi32> to vector<8x128xf32>
    %c0_15 = arith.constant 0 : index
    %c0_16 = arith.constant 0 : index
    %23 = vector.load %arg9[%c0_15, %c0_16] : memref<8x128xf32, #tpu.memory_space<vmem>>, vector<8x128xf32>
    %c0_17 = arith.constant 0 : index
    %c0_18 = arith.constant 0 : index
    %c0_19 = arith.constant 0 : index
    %24 = vector.load %arg7[%c0_17, %c0_18, %c0_19] : memref<1x128x128xf32, #tpu.memory_space<vmem>>, vector<1x128x128xf32>
    %25 = vector.shape_cast %24 : vector<1x128x128xf32> to vector<128x128xf32>
    %cst_20 = arith.constant dense<0.000000e+00> : vector<8x128xf32>
    %26 = tpu.matmul %22, %25, %cst_20 {dimension_numbers = #tpu.dot_dimension_numbers<[1], [0], [0], [1], [0, 0, 1, 1], [], []>} : vector<8x128xf32>, vector<128x128xf32>, vector<8x128xf32> -> vector<8x128xf32>
    %27 = arith.addf %23, %26 : vector<8x128xf32>
    %c0_21 = arith.constant 0 : index
    %c0_22 = arith.constant 0 : index
    %28 = vector.load %arg9[%c0_21, %c0_22] : memref<8x128xf32, #tpu.memory_space<vmem>>, vector<8x128xf32>
    tpu.vector_store %arg9[%c0_21, %c0_22], %27 {strides = array<i32>} : memref<8x128xf32, #tpu.memory_space<vmem>>, vector<8x128xf32>,
    %c0_i32_23 = arith.constant 0 : i32
    %29 = arith.cmpi eq, %arg1, %c0_i32_23 : i32
    %30 = arith.extui %29 : i1 to i32
    %c0_i32_24 = arith.constant 0 : i32
    %31 = arith.cmpi ne, %30, %c0_i32_24 : i32
    scf.if %31 {
      %c0_25 = arith.constant 0 : index
      %c0_26 = arith.constant 0 : index
      %32 = vector.load %arg9[%c0_25, %c0_26] : memref<8x128xf32, #tpu.memory_space<vmem>>, vector<8x128xf32>
      %c0_27 = arith.constant 0 : index
      %c0_28 = arith.constant 0 : index
      %33 = vector.load %arg8[%c0_27, %c0_28] : memref<8x128xf32, #tpu.memory_space<vmem>>, vector<8x128xf32>
      tpu.vector_store %arg8[%c0_27, %c0_28], %32 {strides = array<i32>} : memref<8x128xf32, #tpu.memory_space<vmem>>, vector<8x128xf32>,
    } else {
    }
    return
  }
  func.func @transform_0(%arg0: i32, %arg1: i32) -> (i32, i32) {
    %c0_i32 = arith.constant 0 : i32
    %c0_i32_0 = arith.constant 0 : i32
    return %arg0, %c0_i32 : i32, i32
  }
  func.func @transform_1(%arg0: i32, %arg1: i32) -> (i32, i32, i32) {
    %c0_i32 = arith.constant 0 : i32
    %c0_i32_0 = arith.constant 0 : i32
    %c0_i32_1 = arith.constant 0 : i32
    return %arg1, %c0_i32, %c0_i32_0 : i32, i32, i32
  }
  func.func @transform_2(%arg0: i32, %arg1: i32) -> (i32, i32, i32) {
    %c0_i32 = arith.constant 0 : i32
    %c0_i32_0 = arith.constant 0 : i32
    %c0_i32_1 = arith.constant 0 : i32
    return %arg1, %c0_i32, %c0_i32_0 : i32, i32, i32
  }
  func.func @transform_3(%arg0: i32, %arg1: i32) -> (i32, i32, i32) {
    %c0_i32 = arith.constant 0 : i32
    %c0_i32_0 = arith.constant 0 : i32
    %c0_i32_1 = arith.constant 0 : i32
    return %arg1, %c0_i32, %c0_i32_0 : i32, i32, i32
  }
  func.func @transform_4(%arg0: i32, %arg1: i32) -> (i32, i32, i32) {
    %c0_i32 = arith.constant 0 : i32
    %c0_i32_0 = arith.constant 0 : i32
    %c0_i32_1 = arith.constant 0 : i32
    return %arg1, %c0_i32, %c0_i32_0 : i32, i32, i32
  }
  func.func @transform_5(%arg0: i32, %arg1: i32) -> (i32, i32, i32) {
    %c0_i32 = arith.constant 0 : i32
    %c0_i32_0 = arith.constant 0 : i32
    %c0_i32_1 = arith.constant 0 : i32
    return %arg1, %c0_i32, %c0_i32_0 : i32, i32, i32
  }
  func.func @transform_6(%arg0: i32, %arg1: i32) -> (i32, i32) {
    %c0_i32 = arith.constant 0 : i32
    %c0_i32_0 = arith.constant 0 : i32
    return %arg0, %c0_i32 : i32, i32
  }
}

</mosaic_0001>

<llo_original>
// kernel: tpu_custom_call.1
$region0: #{tpu_custom_call.1}
  #allocation0 [shape = 'u32[]', space=smem, size = 0x4, offset = 0x4, fixed_abs, tag = 'smem constant byte address 0x4 - core index']
  #allocation1 [shape = 'u32[72,128]{1,0:T(1,128)}', space=vmem, size = 0x9000, scoped, tag = 'internal scratch']
  #allocation2 [shape = 'f32[8,128]{1,0:T(8,128)}', space=vmem, size = 0x1000, scoped, tag = 'scratch operand']
  %s0 = inlined_call_operand.hbm [shape: f32[8,16], index: 0, kind: input, shape index: {}]
  %s1 = inlined_call_operand.hbm [shape: f32[1,16,128], index: 1, kind: input, shape index: {}]
  %s2 = inlined_call_operand.vmem [shape: f32[1,1,128], index: 2, kind: input, shape index: {}]
  %s3 = inlined_call_operand.hbm [shape: bf16[1,128,128], index: 3, kind: input, shape index: {}]
  %s4 = inlined_call_operand.vmem [shape: f32[1,1,128], index: 4, kind: input, shape index: {}]
  %s5 = inlined_call_operand.hbm [shape: f32[1,128,128], index: 5, kind: input, shape index: {}]
  %s6 = inlined_call_operand.hbm [shape: f32[8,128], index: 6, kind: output, shape index: {}]
  %s7 = sld [smem:[#allocation0]]
  $region58: #{tpu_custom_call.1} parent=0
    _
  %s9 = ssub.s32 1, %s7
  %s10 = scalar_select 0, %s9, %s7
  $region1: #{tpu_custom_call.1} parent=0
    #allocation3 [shape = 'u8[4096]{0}', space=vmem, size = 0x1000, scoped, tag = 'input window, operand 0, single buffered']
    #allocation4 [shape = 's32[1]{0}', space=sflag, size = 0x4, scoped, tag = 'scoped memory for tpu_custom_call.1']
    #allocation5 [shape = 's32[1]{0}', space=sflag, size = 0x4, scoped, tag = 'scoped memory for tpu_custom_call.1']
    #allocation6 [shape = 'u8[8192]{0}', space=vmem, size = 0x2000, scoped, tag = 'input window, operand 1, single buffered']
    #allocation7 [shape = 's32[1]{0}', space=sflag, size = 0x4, scoped, tag = 'scoped memory for tpu_custom_call.1']
    #allocation8 [shape = 'u8[32768]{0}', space=vmem, size = 0x8000, scoped, tag = 'input window, operand 3, single buffered']
    #allocation9 [shape = 'u8[65536]{0}', space=vmem, size = 0x10000, scoped, tag = 'input window, operand 5, single buffered']
    #allocation10 [shape = 's32[1]{0}', space=sflag, size = 0x4, scoped, tag = 'scoped memory for tpu_custom_call.1']
    #allocation11 [shape = 'u8[4096]{0}', space=vmem, size = 0x1000, scoped, tag = 'output window, operand 0, single buffered']
    %11 = vsyncpa [#allocation4], 0
    %12 = vsyncpa [#allocation7], 0
    %13 = vsyncpa [#allocation10], 0
    %14 = vsyncpa [#allocation5], 0
    // Predicated region
    $region2: #{tpu_custom_call.1} parent=1 // pred_check
      _
    $region3: #{tpu_custom_call.1} parent=1 // pred_check_branch
      %16 = sbr.rel (0) target = $region5
    $region4: #{tpu_custom_call.1} parent=1 // pred_region
      %18 = vsyncadd [#allocation4], 0
      %s20 = sshll.u32 %s0, 4
      %s21 = int_to_ptr.hbm [resolvable:$true] %s20
      %s22 = sshll.u32 [#allocation3], 4
      %s23 = int_to_ptr.vmem [resolvable:$true] %s22
      %25 = dma.hbm_to_vmem [thread:$0]  %s21, 128, %s23, [#allocation4]
    $region5: #{tpu_custom_call.1} parent=1 // pred_fallthru
      _
    // Predicated region
    $region6: #{tpu_custom_call.1} parent=1 // pred_check
      _
    $region7: #{tpu_custom_call.1} parent=1 // pred_check_branch
      %27 = sbr.rel (0) target = $region9
    $region8: #{tpu_custom_call.1} parent=1 // pred_region
      %29 = vsyncadd [#allocation7], 0
      %s30 = sshll.u32 %s1, 4
      %s31 = int_to_ptr.hbm [resolvable:$true] %s30
      %s32 = sshll.u32 [#allocation6], 4
      %s33 = int_to_ptr.vmem [resolvable:$true] %s32
      %38 = dma.hbm_to_vmem [thread:$0]  %s31, 256, %s33, [#allocation7], 128, 128, 8
    $region9: #{tpu_custom_call.1} parent=1 // pred_fallthru
      _
    // Predicated region
    $region10: #{tpu_custom_call.1} parent=1 // pred_check
      _
    $region11: #{tpu_custom_call.1} parent=1 // pred_check_branch
      %40 = sbr.rel (0) target = $region13
    $region12: #{tpu_custom_call.1} parent=1 // pred_region
      _
    $region13: #{tpu_custom_call.1} parent=1 // pred_fallthru
      _
    // Predicated region
    $region14: #{tpu_custom_call.1} parent=1 // pred_check
      _
    $region15: #{tpu_custom_call.1} parent=1 // pred_check_branch
      %42 = sbr.rel (0) target = $region17
    $region16: #{tpu_custom_call.1} parent=1 // pred_region
      %44 = vsyncadd [#allocation7], 0
      %s45 = sshll.u32 %s3, 4
      %s46 = int_to_ptr.hbm [resolvable:$true] %s45
      %s47 = sshll.u32 [#allocation8], 4
      %s48 = int_to_ptr.vmem [resolvable:$true] %s47
      %53 = dma.hbm_to_vmem [thread:$0]  %s46, 1024, %s48, [#allocation7], 64, 64, 4
    $region17: #{tpu_custom_call.1} parent=1 // pred_fallthru
      _
    // Predicated region
    $region18: #{tpu_custom_call.1} parent=1 // pred_check
      _
    $region19: #{tpu_custom_call.1} parent=1 // pred_check_branch
      %55 = sbr.rel (0) target = $region21
    $region20: #{tpu_custom_call.1} parent=1 // pred_region
      _
    $region21: #{tpu_custom_call.1} parent=1 // pred_fallthru
      _
    // Predicated region
    $region22: #{tpu_custom_call.1} parent=1 // pred_check
      _
    $region23: #{tpu_custom_call.1} parent=1 // pred_check_branch
      %57 = sbr.rel (0) target = $region25
    $region24: #{tpu_custom_call.1} parent=1 // pred_region
      %59 = vsyncadd [#allocation10], 0
      %s60 = sshll.u32 %s5, 4
      %s61 = int_to_ptr.hbm [resolvable:$true] %s60
      %s62 = sshll.u32 [#allocation9], 4
      %s63 = int_to_ptr.vmem [resolvable:$true] %s62
      %68 = dma.hbm_to_vmem [thread:$0]  %s61, 2048, %s63, [#allocation10], 128, 128, 8
    $region25: #{tpu_custom_call.1} parent=1 // pred_fallthru
      _
    // Predicated region
    $region26: #{tpu_custom_call.1} parent=1 // pred_check
      _
    $region27: #{tpu_custom_call.1} parent=1 // pred_check_branch
      %70 = sbr.rel (0) target = $region29
    $region28: #{tpu_custom_call.1} parent=1 // pred_region
      %72 = dma.done [#allocation4], 128
    $region29: #{tpu_custom_call.1} parent=1 // pred_fallthru
      _
    // Predicated region
    $region30: #{tpu_custom_call.1} parent=1 // pred_check
      _
    $region31: #{tpu_custom_call.1} parent=1 // pred_check_branch
      %74 = sbr.rel (0) target = $region33
    $region32: #{tpu_custom_call.1} parent=1 // pred_region
      %76 = dma.done [#allocation7], 256
    $region33: #{tpu_custom_call.1} parent=1 // pred_fallthru
      _
    // Predicated region
    $region34: #{tpu_custom_call.1} parent=1 // pred_check
      _
    $region35: #{tpu_custom_call.1} parent=1 // pred_check_branch
      %78 = sbr.rel (0) target = $region37
    $region36: #{tpu_custom_call.1} parent=1 // pred_region
      %80 = dma.done [#allocation7], 1024
    $region37: #{tpu_custom_call.1} parent=1 // pred_fallthru
      _
    // Predicated region
    $region38: #{tpu_custom_call.1} parent=1 // pred_check
      _
    $region39: #{tpu_custom_call.1} parent=1 // pred_check_branch
      %82 = sbr.rel (0) target = $region41
    $region40: #{tpu_custom_call.1} parent=1 // pred_region
      %84 = dma.done [#allocation10], 2048
    $region41: #{tpu_custom_call.1} parent=1 // pred_fallthru
      _
    %p85 = scmp.eq.s32.totalorder 0, 0
    // Predicated region
    $region42: #{tpu_custom_call.1} parent=1 // pred_check
      %p86 = pneg %p85
    $region43: #{tpu_custom_call.1} parent=1 // pred_check_branch
      %88 = sbr.rel (%p86) target = $region45
    $region44: #{tpu_custom_call.1} parent=1 // pred_region
      %89 = vst [vmem:[#allocation2] sm:$0xff] 0.0
    $region45: #{tpu_custom_call.1} parent=1 // pred_fallthru
      _
    %v90 = vld [vmem:[#allocation3] sm:$0xff]
    %v91 = vld [vmem:[#allocation6] sm:$0xff]
    %v92 = vld [vmem:[#allocation6 + $0x8] sm:$0xff]
    %vm93 = vcmask 130048
    %v95 = vsel %vm93, %v90, 0
    %97 = vmatpush.msra.mxu0 0.0
    %98 = vmatpush.msra.mxu0 0.0
    %99 = vmatpush.msra.mxu0 0.0
    %100 = vmatpush.msra.mxu0 0.0
    %101 = vmatpush.msra.mxu0 0.0
    %102 = vmatpush.msra.mxu0 0.0
    %103 = vmatpush.msra.mxu0 0.0
    %104 = vmatpush.msra.mxu0 0.0
    %105 = vmatpush.msra.mxu0 0.0
    %106 = vmatpush.msra.mxu0 0.0
    %107 = vmatpush.msra.mxu0 0.0
    %108 = vmatpush.msra.mxu0 0.0
    %109 = vmatpush.msra.mxu0 0.0
    %110 = vmatpush.msra.mxu0 0.0
    %111 = vmatpush.msra.mxu0 %v92
    %112 = vmatpush.msra.mxu0 %v91
    %113 = vmatmul.f32.gmra.mxu0 %v95
    %v114 = vpop.f32.mrf.mxu0
    %v115 = vadd.f32 0.0, %v114
    %116 = vdwg.mxu0
    %v117 = vld [vmem:[%s2] sm:$0x1]
    %v119 = vperm.slane %v117, 0
    %vm121 = vcmp.lt.f32.partialorder %v115, %v119
    %v122 = vsel %vm121, 1, 0
    %v123 = vcvt.s32.f32 %v122
    %v124 = vpack.c.bf16 %v123, %v123
    %v125 = vld [vmem:[#allocation8] sm:$0xf]
    %v126 = vld [vmem:[#allocation8 + $0x4] sm:$0xf]
    %v127 = vld [vmem:[#allocation8 + $0x8] sm:$0xf]
    %v128 = vld [vmem:[#allocation8 + $0xc] sm:$0xf]
    %v129 = vld [vmem:[#allocation8 + $0x10] sm:$0xf]
    %v130 = vld [vmem:[#allocation8 + $0x14] sm:$0xf]
    %v131 = vld [vmem:[#allocation8 + $0x18] sm:$0xf]
    %v132 = vld [vmem:[#allocation8 + $0x1c] sm:$0xf]
    %v133 = vld [vmem:[#allocation8 + $0x20] sm:$0xf]
    %v134 = vld [vmem:[#allocation8 + $0x24] sm:$0xf]
    %v135 = vld [vmem:[#allocation8 + $0x28] sm:$0xf]
    %v136 = vld [vmem:[#allocation8 + $0x2c] sm:$0xf]
    %v137 = vld [vmem:[#allocation8 + $0x30] sm:$0xf]
    %v138 = vld [vmem:[#allocation8 + $0x34] sm:$0xf]
    %v139 = vld [vmem:[#allocation8 + $0x38] sm:$0xf]
    %v140 = vld [vmem:[#allocation8 + $0x3c] sm:$0xf]
    %v157 = vunpack.c.l.b16 %v125
    %v158 = vunpack.c.l.b16 %v126
    %v159 = vunpack.c.l.b16 %v127
    %v160 = vunpack.c.l.b16 %v128
    %v161 = vunpack.c.l.b16 %v129
    %v162 = vunpack.c.l.b16 %v130
    %v163 = vunpack.c.l.b16 %v131
    %v164 = vunpack.c.l.b16 %v132
    %v165 = vunpack.c.l.b16 %v133
    %v166 = vunpack.c.l.b16 %v134
    %v167 = vunpack.c.l.b16 %v135
    %v168 = vunpack.c.l.b16 %v136
    %v169 = vunpack.c.l.b16 %v137
    %v170 = vunpack.c.l.b16 %v138
    %v171 = vunpack.c.l.b16 %v139
    %v172 = vunpack.c.l.b16 %v140
    %v173 = vpack.c.b16 %v158, %v157
    %v174 = vpack.c.b16 %v160, %v159
    %v175 = vpack.c.b16 %v162, %v161
    %v176 = vpack.c.b16 %v164, %v163
    %v177 = vpack.c.b16 %v166, %v165
    %v178 = vpack.c.b16 %v168, %v167
    %v179 = vpack.c.b16 %v170, %v169
    %v180 = vpack.c.b16 %v172, %v171
    %189 = vmatpush.bf16.msra.mxu0 %v180
    %190 = vmatpush.bf16.msra.mxu0 %v179
    %191 = vmatpush.bf16.msra.mxu0 %v178
    %192 = vmatpush.bf16.msra.mxu0 %v177
    %193 = vmatpush.bf16.msra.mxu0 %v176
    %194 = vmatpush.bf16.msra.mxu0 %v175
    %195 = vmatpush.bf16.msra.mxu0 %v174
    %196 = vmatpush.bf16.msra.mxu0 %v173
    %197 = vmatmul.bf16.gmra.mxu0 %v124
    %v198 = vpop.f32.mrf.mxu0
    %v199 = vadd.f32 0.0, %v198
    %v200 = vpop.f32.mrf.mxu0
    %201 = vdwg.mxu0
    %v202 = vld [vmem:[%s4] sm:$0x1]
    %v204 = vperm.slane %v202, 0
    %vm206 = vcmp.eq.f32.partialorder %v199, %v204
    %v207 = vsel %vm206, 1, 0
    %v208 = vcvt.s32.f32 %v207
    %v209 = vld [vmem:[#allocation2] sm:$0xff]
    %v210 = vld [vmem:[#allocation9] sm:$0xff]
    %v211 = vld [vmem:[#allocation9 + $0x8] sm:$0xff]
    %v212 = vld [vmem:[#allocation9 + $0x10] sm:$0xff]
    %v213 = vld [vmem:[#allocation9 + $0x18] sm:$0xff]
    %v214 = vld [vmem:[#allocation9 + $0x20] sm:$0xff]
    %v215 = vld [vmem:[#allocation9 + $0x28] sm:$0xff]
    %v216 = vld [vmem:[#allocation9 + $0x30] sm:$0xff]
    %v217 = vld [vmem:[#allocation9 + $0x38] sm:$0xff]
    %v218 = vld [vmem:[#allocation9 + $0x40] sm:$0xff]
    %v219 = vld [vmem:[#allocation9 + $0x48] sm:$0xff]
    %v220 = vld [vmem:[#allocation9 + $0x50] sm:$0xff]
    %v221 = vld [vmem:[#allocation9 + $0x58] sm:$0xff]
    %v222 = vld [vmem:[#allocation9 + $0x60] sm:$0xff]
    %v223 = vld [vmem:[#allocation9 + $0x68] sm:$0xff]
    %v224 = vld [vmem:[#allocation9 + $0x70] sm:$0xff]
    %v225 = vld [vmem:[#allocation9 + $0x78] sm:$0xff]
    %226 = vmatpush.msra.mxu0 %v225
    %227 = vmatpush.msra.mxu0 %v224
    %228 = vmatpush.msra.mxu0 %v223
    %229 = vmatpush.msra.mxu0 %v222
    %230 = vmatpush.msra.mxu0 %v221
    %231 = vmatpush.msra.mxu0 %v220
    %232 = vmatpush.msra.mxu0 %v219
    %233 = vmatpush.msra.mxu0 %v218
    %234 = vmatpush.msra.mxu0 %v217
    %235 = vmatpush.msra.mxu0 %v216
    %236 = vmatpush.msra.mxu0 %v215
    %237 = vmatpush.msra.mxu0 %v214
    %238 = vmatpush.msra.mxu0 %v213
    %239 = vmatpush.msra.mxu0 %v212
    %240 = vmatpush.msra.mxu0 %v211
    %241 = vmatpush.msra.mxu0 %v210
    %242 = vmatmul.f32.gmra.mxu0 %v208
    %v243 = vpop.f32.mrf.mxu0
    %v244 = vadd.f32 0.0, %v243
    %245 = vdwg.mxu0
    %v246 = vadd.f32 %v209, %v244
    %247 = vst [vmem:[#allocation2] sm:$0xff] %v246
    // Predicated region
    $region46: #{tpu_custom_call.1} parent=1 // pred_check
      %p248 = pneg %p85
    $region47: #{tpu_custom_call.1} parent=1 // pred_check_branch
      %250 = sbr.rel (%p248) target = $region49
    $region48: #{tpu_custom_call.1} parent=1 // pred_region
      %v251 = vld [vmem:[#allocation2] sm:$0xff]
      %252 = vst [vmem:[#allocation11] sm:$0xff] %v251
    $region49: #{tpu_custom_call.1} parent=1 // pred_fallthru
      _
    // Predicated region
    $region50: #{tpu_custom_call.1} parent=1 // pred_check
      _
    $region51: #{tpu_custom_call.1} parent=1 // pred_check_branch
      %254 = sbr.rel (0) target = $region53
    $region52: #{tpu_custom_call.1} parent=1 // pred_region
      %256 = vsyncadd [#allocation5], 0
      %s258 = sshll.u32 [#allocation11], 4
      %s259 = int_to_ptr.vmem [resolvable:$true] %s258
      %s260 = sshll.u32 %s6, 4
      %s261 = int_to_ptr.hbm [resolvable:$true] %s260
      %263 = dma.vmem_to_hbm [thread:$0]  %s259, 128, %s261, [#allocation5]
    $region53: #{tpu_custom_call.1} parent=1 // pred_fallthru
      _
    // Predicated region
    $region54: #{tpu_custom_call.1} parent=1 // pred_check
      _
    $region55: #{tpu_custom_call.1} parent=1 // pred_check_branch
      %265 = sbr.rel (0) target = $region57
    $region56: #{tpu_custom_call.1} parent=1 // pred_region
      %267 = dma.done [#allocation5], 128
    $region57: #{tpu_custom_call.1} parent=1 // pred_fallthru
      _
    %268 = vsyncpa [#allocation4], 1
    %269 = vsyncpa [#allocation7], 1
    %270 = vsyncpa [#allocation10], 1
    %271 = vsyncpa [#allocation5], 1

// kernel: tpu_custom_call.1
$region0: #{tpu_custom_call.1}
  #allocation0 [shape = 'u32[]', space=smem, size = 0x4, offset = 0x4, fixed_abs, tag = 'smem constant byte address 0x4 - core index']
  #allocation1 [shape = 'u32[72,128]{1,0:T(1,128)}', space=vmem, size = 0x9000, scoped, tag = 'internal scratch']
  #allocation2 [shape = 'f32[8,128]{1,0:T(8,128)}', space=vmem, size = 0x1000, scoped, tag = 'scratch operand']
  %s0 = inlined_call_operand.hbm [shape: f32[8,16], index: 0, kind: input, shape index: {}]
  %s1 = inlined_call_operand.hbm [shape: f32[1,16,128], index: 1, kind: input, shape index: {}]
  %s2 = inlined_call_operand.vmem [shape: f32[1,1,128], index: 2, kind: input, shape index: {}]
  %s3 = inlined_call_operand.hbm [shape: bf16[1,128,128], index: 3, kind: input, shape index: {}]
  %s4 = inlined_call_operand.vmem [shape: f32[1,1,128], index: 4, kind: input, shape index: {}]
  %s5 = inlined_call_operand.hbm [shape: f32[1,128,128], index: 5, kind: input, shape index: {}]
  %s6 = inlined_call_operand.hbm [shape: f32[8,128], index: 6, kind: output, shape index: {}]
  %s7 = sld [smem:[#allocation0]]
  $region58: #{tpu_custom_call.1} parent=0
    _
  %s9 = ssub.s32 1, %s7
  %s10 = scalar_select 0, %s9, %s7
  $region1: #{tpu_custom_call.1} parent=0
    #allocation3 [shape = 'u8[4096]{0}', space=vmem, size = 0x1000, scoped, tag = 'input window, operand 0, single buffered']
    #allocation4 [shape = 's32[1]{0}', space=sflag, size = 0x4, scoped, tag = 'scoped memory for tpu_custom_call.1']
    #allocation5 [shape = 's32[1]{0}', space=sflag, size = 0x4, scoped, tag = 'scoped memory for tpu_custom_call.1']
    #allocation6 [shape = 'u8[8192]{0}', space=vmem, size = 0x2000, scoped, tag = 'input window, operand 1, single buffered']
    #allocation7 [shape = 's32[1]{0}', space=sflag, size = 0x4, scoped, tag = 'scoped memory for tpu_custom_call.1']
    #allocation8 [shape = 'u8[32768]{0}', space=vmem, size = 0x8000, scoped, tag = 'input window, operand 3, single buffered']
    #allocation9 [shape = 'u8[65536]{0}', space=vmem, size = 0x10000, scoped, tag = 'input window, operand 5, single buffered']
    #allocation10 [shape = 's32[1]{0}', space=sflag, size = 0x4, scoped, tag = 'scoped memory for tpu_custom_call.1']
    #allocation11 [shape = 'u8[4096]{0}', space=vmem, size = 0x1000, scoped, tag = 'output window, operand 0, single buffered']
    %11 = vsyncpa [#allocation4], 0
    %12 = vsyncpa [#allocation7], 0
    %13 = vsyncpa [#allocation10], 0
    %14 = vsyncpa [#allocation5], 0
    // Predicated region
    $region2: #{tpu_custom_call.1} parent=1 // pred_check
      _
    $region3: #{tpu_custom_call.1} parent=1 // pred_check_branch
      %16 = sbr.rel (0) target = $region5
    $region4: #{tpu_custom_call.1} parent=1 // pred_region
      %18 = vsyncadd [#allocation4], 0
      %s20 = sshll.u32 %s0, 4
      %s21 = int_to_ptr.hbm [resolvable:$true] %s20
      %s22 = sshll.u32 [#allocation3], 4
      %s23 = int_to_ptr.vmem [resolvable:$true] %s22
      %25 = dma.hbm_to_vmem [thread:$0]  %s21, 128, %s23, [#allocation4]
    $region5: #{tpu_custom_call.1} parent=1 // pred_fallthru
      _
    // Predicated region
    $region6: #{tpu_custom_call.1} parent=1 // pred_check
      _
    $region7: #{tpu_custom_call.1} parent=1 // pred_check_branch
      %27 = sbr.rel (0) target = $region9
    $region8: #{tpu_custom_call.1} parent=1 // pred_region
      %29 = vsyncadd [#allocation7], 0
      %s30 = sshll.u32 %s1, 4
      %s31 = int_to_ptr.hbm [resolvable:$true] %s30
      %s32 = sshll.u32 [#allocation6], 4
      %s33 = int_to_ptr.vmem [resolvable:$true] %s32
      %38 = dma.hbm_to_vmem [thread:$0]  %s31, 256, %s33, [#allocation7], 128, 128, 8
    $region9: #{tpu_custom_call.1} parent=1 // pred_fallthru
      _
    // Predicated region
    $region10: #{tpu_custom_call.1} parent=1 // pred_check
      _
    $region11: #{tpu_custom_call.1} parent=1 // pred_check_branch
      %40 = sbr.rel (0) target = $region13
    $region12: #{tpu_custom_call.1} parent=1 // pred_region
      _
    $region13: #{tpu_custom_call.1} parent=1 // pred_fallthru
      _
    // Predicated region
    $region14: #{tpu_custom_call.1} parent=1 // pred_check
      _
    $region15: #{tpu_custom_call.1} parent=1 // pred_check_branch
      %42 = sbr.rel (0) target = $region17
    $region16: #{tpu_custom_call.1} parent=1 // pred_region
      %44 = vsyncadd [#allocation7], 0
      %s45 = sshll.u32 %s3, 4
      %s46 = int_to_ptr.hbm [resolvable:$true] %s45
      %s47 = sshll.u32 [#allocation8], 4
      %s48 = int_to_ptr.vmem [resolvable:$true] %s47
      %53 = dma.hbm_to_vmem [thread:$0]  %s46, 1024, %s48, [#allocation7], 64, 64, 4
    $region17: #{tpu_custom_call.1} parent=1 // pred_fallthru
      _
    // Predicated region
    $region18: #{tpu_custom_call.1} parent=1 // pred_check
      _
    $region19: #{tpu_custom_call.1} parent=1 // pred_check_branch
      %55 = sbr.rel (0) target = $region21
    $region20: #{tpu_custom_call.1} parent=1 // pred_region
      _
    $region21: #{tpu_custom_call.1} parent=1 // pred_fallthru
      _
    // Predicated region
    $region22: #{tpu_custom_call.1} parent=1 // pred_check
      _
    $region23: #{tpu_custom_call.1} parent=1 // pred_check_branch
      %57 = sbr.rel (0) target = $region25
    $region24: #{tpu_custom_call.1} parent=1 // pred_region
      %59 = vsyncadd [#allocation10], 0
      %s60 = sshll.u32 %s5, 4
      %s61 = int_to_ptr.hbm [resolvable:$true] %s60
      %s62 = sshll.u32 [#allocation9], 4
      %s63 = int_to_ptr.vmem [resolvable:$true] %s62
      %68 = dma.hbm_to_vmem [thread:$0]  %s61, 2048, %s63, [#allocation10], 128, 128, 8
    $region25: #{tpu_custom_call.1} parent=1 // pred_fallthru
      _
    // Predicated region
    $region26: #{tpu_custom_call.1} parent=1 // pred_check
      _
    $region27: #{tpu_custom_call.1} parent=1 // pred_check_branch
      %70 = sbr.rel (0) target = $region29
    $region28: #{tpu_custom_call.1} parent=1 // pred_region
      %72 = dma.done [#allocation4], 128
    $region29: #{tpu_custom_call.1} parent=1 // pred_fallthru
      _
    // Predicated region
    $region30: #{tpu_custom_call.1} parent=1 // pred_check
      _
    $region31: #{tpu_custom_call.1} parent=1 // pred_check_branch
      %74 = sbr.rel (0) target = $region33
    $region32: #{tpu_custom_call.1} parent=1 // pred_region
      %76 = dma.done [#allocation7], 256
    $region33: #{tpu_custom_call.1} parent=1 // pred_fallthru
      _
    // Predicated region
    $region34: #{tpu_custom_call.1} parent=1 // pred_check
      _
    $region35: #{tpu_custom_call.1} parent=1 // pred_check_branch
      %78 = sbr.rel (0) target = $region37
    $region36: #{tpu_custom_call.1} parent=1 // pred_region
      %80 = dma.done [#allocation7], 1024
    $region37: #{tpu_custom_call.1} parent=1 // pred_fallthru
      _
    // Predicated region
    $region38: #{tpu_custom_call.1} parent=1 // pred_check
      _
    $region39: #{tpu_custom_call.1} parent=1 // pred_check_branch
      %82 = sbr.rel (0) target = $region41
    $region40: #{tpu_custom_call.1} parent=1 // pred_region
      %84 = dma.done [#allocation10], 2048
    $region41: #{tpu_custom_call.1} parent=1 // pred_fallthru
      _
    %p85 = scmp.eq.s32.totalorder 0, 0
    // Predicated region
    $region42: #{tpu_custom_call.1} parent=1 // pred_check
      %p86 = pneg %p85
    $region43: #{tpu_custom_call.1} parent=1 // pred_check_branch
      %88 = sbr.rel (%p86) target = $region45
    $region44: #{tpu_custom_call.1} parent=1 // pred_region
      %89 = vst [vmem:[#allocation2] sm:$0xff] 0.0
    $region45: #{tpu_custom_call.1} parent=1 // pred_fallthru
      _
    %v90 = vld [vmem:[#allocation3] sm:$0xff]
    %v91 = vld [vmem:[#allocation6] sm:$0xff]
    %v92 = vld [vmem:[#allocation6 + $0x8] sm:$0xff]
    %vm93 = vcmask 130048
    %v95 = vsel %vm93, %v90, 0
    %97 = vmatpush.msra.mxu0 0.0
    %98 = vmatpush.msra.mxu0 0.0
    %99 = vmatpush.msra.mxu0 0.0
    %100 = vmatpush.msra.mxu0 0.0
    %101 = vmatpush.msra.mxu0 0.0
    %102 = vmatpush.msra.mxu0 0.0
    %103 = vmatpush.msra.mxu0 0.0
    %104 = vmatpush.msra.mxu0 0.0
    %105 = vmatpush.msra.mxu0 0.0
    %106 = vmatpush.msra.mxu0 0.0
    %107 = vmatpush.msra.mxu0 0.0
    %108 = vmatpush.msra.mxu0 0.0
    %109 = vmatpush.msra.mxu0 0.0
    %110 = vmatpush.msra.mxu0 0.0
    %111 = vmatpush.msra.mxu0 %v92
    %112 = vmatpush.msra.mxu0 %v91
    %113 = vmatmul.f32.gmra.mxu0 %v95
    %v114 = vpop.f32.mrf.mxu0
    %v115 = vadd.f32 0.0, %v114
    %116 = vdwg.mxu0
    %v117 = vld [vmem:[%s2] sm:$0x1]
    %v119 = vperm.slane %v117, 0
    %vm121 = vcmp.lt.f32.partialorder %v115, %v119
    %v122 = vsel %vm121, 1, 0
    %v123 = vcvt.s32.f32 %v122
    %v124 = vpack.c.bf16 %v123, %v123
    %v125 = vld [vmem:[#allocation8] sm:$0xf]
    %v126 = vld [vmem:[#allocation8 + $0x4] sm:$0xf]
    %v127 = vld [vmem:[#allocation8 + $0x8] sm:$0xf]
    %v128 = vld [vmem:[#allocation8 + $0xc] sm:$0xf]
    %v129 = vld [vmem:[#allocation8 + $0x10] sm:$0xf]
    %v130 = vld [vmem:[#allocation8 + $0x14] sm:$0xf]
    %v131 = vld [vmem:[#allocation8 + $0x18] sm:$0xf]
    %v132 = vld [vmem:[#allocation8 + $0x1c] sm:$0xf]
    %v133 = vld [vmem:[#allocation8 + $0x20] sm:$0xf]
    %v134 = vld [vmem:[#allocation8 + $0x24] sm:$0xf]
    %v135 = vld [vmem:[#allocation8 + $0x28] sm:$0xf]
    %v136 = vld [vmem:[#allocation8 + $0x2c] sm:$0xf]
    %v137 = vld [vmem:[#allocation8 + $0x30] sm:$0xf]
    %v138 = vld [vmem:[#allocation8 + $0x34] sm:$0xf]
    %v139 = vld [vmem:[#allocation8 + $0x38] sm:$0xf]
    %v140 = vld [vmem:[#allocation8 + $0x3c] sm:$0xf]
    %v157 = vunpack.c.l.b16 %v125
    %v158 = vunpack.c.l.b16 %v126
    %v159 = vunpack.c.l.b16 %v127
    %v160 = vunpack.c.l.b16 %v128
    %v161 = vunpack.c.l.b16 %v129
    %v162 = vunpack.c.l.b16 %v130
    %v163 = vunpack.c.l.b16 %v131
    %v164 = vunpack.c.l.b16 %v132
    %v165 = vunpack.c.l.b16 %v133
    %v166 = vunpack.c.l.b16 %v134
    %v167 = vunpack.c.l.b16 %v135
    %v168 = vunpack.c.l.b16 %v136
    %v169 = vunpack.c.l.b16 %v137
    %v170 = vunpack.c.l.b16 %v138
    %v171 = vunpack.c.l.b16 %v139
    %v172 = vunpack.c.l.b16 %v140
    %v173 = vpack.c.b16 %v158, %v157
    %v174 = vpack.c.b16 %v160, %v159
    %v175 = vpack.c.b16 %v162, %v161
    %v176 = vpack.c.b16 %v164, %v163
    %v177 = vpack.c.b16 %v166, %v165
    %v178 = vpack.c.b16 %v168, %v167
    %v179 = vpack.c.b16 %v170, %v169
    %v180 = vpack.c.b16 %v172, %v171
    %189 = vmatpush.bf16.msra.mxu0 %v180
    %190 = vmatpush.bf16.msra.mxu0 %v179
    %191 = vmatpush.bf16.msra.mxu0 %v178
    %192 = vmatpush.bf16.msra.mxu0 %v177
    %193 = vmatpush.bf16.msra.mxu0 %v176
    %194 = vmatpush.bf16.msra.mxu0 %v175
    %195 = vmatpush.bf16.msra.mxu0 %v174
    %196 = vmatpush.bf16.msra.mxu0 %v173
    %197 = vmatmul.bf16.gmra.mxu0 %v124
    %v198 = vpop.f32.mrf.mxu0
    %v199 = vadd.f32 0.0, %v198
    %v200 = vpop.f32.mrf.mxu0
    %201 = vdwg.mxu0
    %v202 = vld [vmem:[%s4] sm:$0x1]
    %v204 = vperm.slane %v202, 0
    %vm206 = vcmp.eq.f32.partialorder %v199, %v204
    %v207 = vsel %vm206, 1, 0
    %v208 = vcvt.s32.f32 %v207
    %v209 = vld [vmem:[#allocation2] sm:$0xff]
    %v210 = vld [vmem:[#allocation9] sm:$0xff]
    %v211 = vld [vmem:[#allocation9 + $0x8] sm:$0xff]
    %v212 = vld [vmem:[#allocation9 + $0x10] sm:$0xff]
    %v213 = vld [vmem:[#allocation9 + $0x18] sm:$0xff]
    %v214 = vld [vmem:[#allocation9 + $0x20] sm:$0xff]
    %v215 = vld [vmem:[#allocation9 + $0x28] sm:$0xff]
    %v216 = vld [vmem:[#allocation9 + $0x30] sm:$0xff]
    %v217 = vld [vmem:[#allocation9 + $0x38] sm:$0xff]
    %v218 = vld [vmem:[#allocation9 + $0x40] sm:$0xff]
    %v219 = vld [vmem:[#allocation9 + $0x48] sm:$0xff]
    %v220 = vld [vmem:[#allocation9 + $0x50] sm:$0xff]
    %v221 = vld [vmem:[#allocation9 + $0x58] sm:$0xff]
    %v222 = vld [vmem:[#allocation9 + $0x60] sm:$0xff]
    %v223 = vld [vmem:[#allocation9 + $0x68] sm:$0xff]
    %v224 = vld [vmem:[#allocation9 + $0x70] sm:$0xff]
    %v225 = vld [vmem:[#allocation9 + $0x78] sm:$0xff]
    %226 = vmatpush.msra.mxu0 %v225
    %227 = vmatpush.msra.mxu0 %v224
    %228 = vmatpush.msra.mxu0 %v223
    %229 = vmatpush.msra.mxu0 %v222
    %230 = vmatpush.msra.mxu0 %v221
    %231 = vmatpush.msra.mxu0 %v220
    %232 = vmatpush.msra.mxu0 %v219
    %233 = vmatpush.msra.mxu0 %v218
    %234 = vmatpush.msra.mxu0 %v217
    %235 = vmatpush.msra.mxu0 %v216
    %236 = vmatpush.msra.mxu0 %v215
    %237 = vmatpush.msra.mxu0 %v214
    %238 = vmatpush.msra.mxu0 %v213
    %239 = vmatpush.msra.mxu0 %v212
    %240 = vmatpush.msra.mxu0 %v211
    %241 = vmatpush.msra.mxu0 %v210
    %242 = vmatmul.f32.gmra.mxu0 %v208
    %v243 = vpop.f32.mrf.mxu0
    %v244 = vadd.f32 0.0, %v243
    %245 = vdwg.mxu0
    %v246 = vadd.f32 %v209, %v244
    %247 = vst [vmem:[#allocation2] sm:$0xff] %v246
    // Predicated region
    $region46: #{tpu_custom_call.1} parent=1 // pred_check
      %p248 = pneg %p85
    $region47: #{tpu_custom_call.1} parent=1 // pred_check_branch
      %250 = sbr.rel (%p248) target = $region49
    $region48: #{tpu_custom_call.1} parent=1 // pred_region
      %v251 = vld [vmem:[#allocation2] sm:$0xff]
      %252 = vst [vmem:[#allocation11] sm:$0xff] %v251
    $region49: #{tpu_custom_call.1} parent=1 // pred_fallthru
      _
    // Predicated region
    $region50: #{tpu_custom_call.1} parent=1 // pred_check
      _
    $region51: #{tpu_custom_call.1} parent=1 // pred_check_branch
      %254 = sbr.rel (0) target = $region53
    $region52: #{tpu_custom_call.1} parent=1 // pred_region
      %256 = vsyncadd [#allocation5], 0
      %s258 = sshll.u32 [#allocation11], 4
      %s259 = int_to_ptr.vmem [resolvable:$true] %s258
      %s260 = sshll.u32 %s6, 4
      %s261 = int_to_ptr.hbm [resolvable:$true] %s260
      %263 = dma.vmem_to_hbm [thread:$0]  %s259, 128, %s261, [#allocation5]
    $region53: #{tpu_custom_call.1} parent=1 // pred_fallthru
      _
    // Predicated region
    $region54: #{tpu_custom_call.1} parent=1 // pred_check
      _
    $region55: #{tpu_custom_call.1} parent=1 // pred_check_branch
      %265 = sbr.rel (0) target = $region57
    $region56: #{tpu_custom_call.1} parent=1 // pred_region
      %267 = dma.done [#allocation5], 128
    $region57: #{tpu_custom_call.1} parent=1 // pred_fallthru
      _
    %268 = vsyncpa [#allocation4], 1
    %269 = vsyncpa [#allocation7], 1
    %270 = vsyncpa [#allocation10], 1
    %271 = vsyncpa [#allocation5], 1

</llo_original>
